<compile_context>
chip_gen: v7x
topology: tpu7x:2x2x1
jax: 0.10.0
libtpu: 0.0.40
codegen_flags: <defaults>
</compile_context>

<pallas_src>
import functools
from typing import NamedTuple

import jax
import jax.numpy as jnp
from jax import lax
from jax.experimental import pallas as pl
from jax.experimental.pallas import tpu as pltpu


class StructMat(NamedTuple):
    Gii: jax.Array
    Gti: jax.Array
    Gt: jax.Array


def _round_up(x, m):
    return ((x + m - 1) // m) * m


# VMEM sizing: keep pipeline buffers well under v7x's 64 MiB physical VMEM.
_VMEM_BUFFER_BUDGET = 40 * 1024 * 1024   # target for double-buffered tiles
_VMEM_LIMIT_BYTES = 48 * 1024 * 1024     # explicit scoped limit (with headroom)


# --------------------- Gii kernel (computed once, no grid) ---------------------

def _gram_ii_kernel(xi_ref, gii_ref, *, inv_n):
    xi = xi_ref[...]                                           # (Pi_pad, N_pad)
    gii = lax.dot_general(xi, xi, (((1,), (1,)), ((), ())),
                          preferred_element_type=jnp.float32)
    gii_ref[...] = (gii * inv_n).astype(gii_ref.dtype)


# --------------- Gti / Gt kernel, gridded over row tiles of Xt -----------------

def _gram_ti_kernel(xt_ref, xi_ref, gti_ref, gt_ref, *, inv_n):
    xt = xt_ref[...]                                           # (TB, N_pad)
    xi = xi_ref[...]                                           # (Pi_pad, N_pad)

    # NT contraction on the MXU (contract dim 1 of both operands), no transpose.
    gti = lax.dot_general(xt, xi, (((1,), (1,)), ((), ())),
                          preferred_element_type=jnp.float32)
    gti_ref[...] = (gti * inv_n).astype(gti_ref.dtype)

    xt32 = xt.astype(jnp.float32)
    gt = jnp.sum(xt32 * xt32, axis=-1) * inv_n                 # (TB,)
    gt_ref[...] = gt.reshape(gt_ref.shape).astype(gt_ref.dtype)


def _choose_row_tile(B, N_pad, Pi_pad, in_bytes, out_bytes):
    """Largest TB (<= 512, power-of-two-ish halving) whose buffers fit VMEM."""
    tb = 512
    while tb > 8:
        footprint = (
            2 * tb * N_pad * in_bytes        # Xt tile, double buffered
            + 2 * Pi_pad * N_pad * in_bytes  # Xi (counted x2, conservative)
            + 2 * tb * Pi_pad * out_bytes    # Gti out tile, double buffered
            + 2 * 8 * tb * out_bytes         # Gt out tile (sublane padded)
        )
        if footprint <= _VMEM_BUFFER_BUDGET:
            break
        tb //= 2
    # Never tile larger than the (row-aligned) problem itself.
    return max(8, min(tb, _round_up(B, 8)))


def feat_to_gram(Xt, Xi, *, row_tile=None):
    """Xt: (Pt, *batch_dims, N), Xi: (Pi, N). Returns StructMat(Gii, Gti, Gt)."""
    Pi, N = Xi.shape
    assert Xt.shape[-1] == N, "feature dim mismatch"
    lead_shape = Xt.shape[:-1]                                 # (Pt, *batch_dims)
    B = 1
    for d in lead_shape:
        B *= d

    gii_dtype = Xi.dtype
    gti_dtype = jnp.result_type(Xt.dtype, Xi.dtype)
    gt_dtype = Xt.dtype

    inv_n = 1.0 / float(N)   # divide by the *original* N, as in the module

    # Zero-pad Pi and N up to lane width so MXU operands / stores are unmasked.
    N_pad = _round_up(N, 128)
    Pi_pad = _round_up(Pi, 128)

    xi_p = Xi
    if (Pi_pad, N_pad) != (Pi, N):
        xi_p = jnp.pad(Xi, ((0, Pi_pad - Pi), (0, N_pad - N)))

    # Row-tile size derived from VMEM budget (v7x-safe), unless overridden.
    in_bytes = max(jnp.dtype(Xt.dtype).itemsize, jnp.dtype(Xi.dtype).itemsize)
    out_bytes = jnp.dtype(gti_dtype).itemsize
    TB = row_tile if row_tile is not None else _choose_row_tile(
        B, N_pad, Pi_pad, in_bytes, out_bytes)
    TB = max(8, _round_up(TB, 8))
    # TODO(synk): for very large N add a second ("arbitrary", last) grid axis
    # over K-chunks of N with an f32 VMEM accumulator instead of shrinking TB.

    B_pad = _round_up(B, TB)
    xt_flat = Xt.reshape(B, N)
    if B_pad != B or N_pad != N:
        xt_flat = jnp.pad(xt_flat, ((0, B_pad - B), (0, N_pad - N)))
    num_tiles = B_pad // TB

    # ---- Gii: single small pallas_call (Xt-independent, computed once). ----
    gii_full = pl.pallas_call(
        functools.partial(_gram_ii_kernel, inv_n=inv_n),
        out_shape=jax.ShapeDtypeStruct((Pi_pad, Pi_pad), gii_dtype),
        in_specs=[pl.BlockSpec(memory_space=pltpu.MemorySpace.VMEM)],
        out_specs=pl.BlockSpec(memory_space=pltpu.MemorySpace.VMEM),
    )(xi_p)

    # ---- Gti / Gt: gridded over row tiles of Xt (parallel axis). ----
    gti_full, gt_full = pl.pallas_call(
        functools.partial(_gram_ti_kernel, inv_n=inv_n),
        out_shape=(
            jax.ShapeDtypeStruct((B_pad, Pi_pad), gti_dtype),
            jax.ShapeDtypeStruct((num_tiles, 1, TB), gt_dtype),
        ),
        grid_spec=pltpu.PrefetchScalarGridSpec(
            num_scalar_prefetch=0,
            grid=(num_tiles,),
            in_specs=[
                pl.BlockSpec((TB, N_pad), lambda i: (i, 0)),     # Xt row tile
                # Constant block index: Xi is DMA'd once and stays resident.
                pl.BlockSpec((Pi_pad, N_pad), lambda i: (0, 0)),
            ],
            out_specs=[
                pl.BlockSpec((TB, Pi_pad), lambda i: (i, 0)),    # Gti row tile
                # Lane-dense Gt: one (1, TB) row per grid step, no (TB,1) store.
                pl.BlockSpec((1, 1, TB), lambda i: (i, 0, 0)),
            ],
        ),
        compiler_params=pltpu.CompilerParams(
            dimension_semantics=("parallel",),
            vmem_limit_bytes=_VMEM_LIMIT_BYTES,
        ),
    )(xt_flat, xi_p)

    gii = gii_full[:Pi, :Pi]
    gti = gti_full[:B, :Pi].reshape(*lead_shape, Pi)
    gt = gt_full.reshape(-1)[:B].reshape(lead_shape)
    return StructMat(Gii=gii, Gti=gti, Gt=gt)


if __name__ == "__main__":
    # Shapes consistent with the module: Xi (Pi, N), Xt (Pt, *batch_dims, N).
    Pi, N = 16, 32
    Pt, batch = 8, 2

    key = jax.random.PRNGKey(0)
    k_xi, k_xt = jax.random.split(key)
    # Deterministic stand-in for torch.randn((Pi, N)) init of the inducing points.
    Xi = jax.random.normal(k_xi, (Pi, N), dtype=jnp.float32)
    Xt = jax.random.normal(k_xt, (Pt, batch, N), dtype=jnp.float32)

    out = feat_to_gram(Xt, Xi)
    out = jax.tree_util.tree_map(jax.block_until_ready, out)

    # Reference check (plain JAX) for correctness.
    ref_Gii = (Xi @ Xi.T) / N
    ref_Gti = (Xt @ Xi.T) / N
    ref_Gt = jnp.sum(Xt * Xt, axis=-1) / N
    assert out.Gii.shape == (Pi, Pi)
    assert out.Gti.shape == (Pt, batch, Pi)
    assert out.Gt.shape == (Pt, batch)
    assert jnp.allclose(out.Gii, ref_Gii, atol=1e-5)
    assert jnp.allclose(out.Gti, ref_Gti, atol=1e-5)
    assert jnp.allclose(out.Gt, ref_Gt, atol=1e-5)

    print("KERNEL_OK")
</pallas_src>

<mosaic_0001>
module attributes {stable_mosaic.version = 11 : i64} {
  func.func @_gram_ii_kernel(%arg0: memref<128x128xf32, #tpu.memory_space<vmem>>, %arg1: memref<128x128xf32, #tpu.memory_space<vmem>>) attributes {dimension_semantics = [], scalar_prefetch = 0 : i64, scratch_operands = 0 : i64, tpu.core_type = #tpu.core_type<tc>} {
    %c0 = arith.constant 0 : index
    %c0_0 = arith.constant 0 : index
    %0 = vector.load %arg0[%c0, %c0_0] : memref<128x128xf32, #tpu.memory_space<vmem>>, vector<128x128xf32>
    %cst = arith.constant dense<0.000000e+00> : vector<128x128xf32>
    %1 = tpu.matmul %0, %0, %cst {dimension_numbers = #tpu.dot_dimension_numbers<[1], [1], [0], [0], [0, 0, 1, 0], [], []>} : vector<128x128xf32>, vector<128x128xf32>, vector<128x128xf32> -> vector<128x128xf32>
    %cst_1 = arith.constant 3.125000e-02 : f32
    %2 = vector.broadcast %cst_1 : f32 to vector<128x128xf32>
    %3 = arith.mulf %1, %2 : vector<128x128xf32>
    %c0_2 = arith.constant 0 : index
    %c0_3 = arith.constant 0 : index
    %4 = vector.load %arg1[%c0_2, %c0_3] : memref<128x128xf32, #tpu.memory_space<vmem>>, vector<128x128xf32>
    tpu.vector_store %arg1[%c0_2, %c0_3], %3 {strides = array<i32>} : memref<128x128xf32, #tpu.memory_space<vmem>>, vector<128x128xf32>,
    return
  }
}

</mosaic_0001>

<llo_original>
// kernel: tpu_custom_call.1
$region0: #{tpu_custom_call.1}
  #allocation0 [shape = 'u32[]', space=smem, size = 0x4, offset = 0x4, fixed_abs, tag = 'smem constant byte address 0x4 - core index']
  #allocation1 [shape = 'u32[144,128]{1,0:T(1,128)}', space=vmem, size = 0x12000, scoped, tag = 'internal scratch']
  %s0 = inlined_call_operand.hbm [shape: f32[128,128], index: 0, kind: input, shape index: {}]
  %s1 = inlined_call_operand.hbm [shape: f32[128,128], index: 1, kind: output, shape index: {}]
  %s2 = sld [smem:[#allocation0]]
  $region18: #{tpu_custom_call.1} parent=0
    _
  %s4 = ssub.s32 1, %s2
  %s5 = scalar_select 0, %s4, %s2
  $region1: #{tpu_custom_call.1} parent=0
    #allocation2 [shape = 'u8[65536]{0}', space=vmem, size = 0x10000, scoped, tag = 'input window, operand 0, single buffered']
    #allocation3 [shape = 's32[1]{0}', space=sflag, size = 0x4, scoped, tag = 'scoped memory for tpu_custom_call.1']
    #allocation4 [shape = 's32[1]{0}', space=sflag, size = 0x4, scoped, tag = 'scoped memory for tpu_custom_call.1']
    #allocation5 [shape = 'u8[65536]{0}', space=vmem, size = 0x10000, scoped, tag = 'output window, operand 0, single buffered']
    %6 = vsyncpa [#allocation3], 0
    %7 = vsyncpa [#allocation4], 0
    // Predicated region
    $region2: #{tpu_custom_call.1} parent=1 // pred_check
      _
    $region3: #{tpu_custom_call.1} parent=1 // pred_check_branch
      %9 = sbr.rel (0) target = $region5
    $region4: #{tpu_custom_call.1} parent=1 // pred_region
      %s11 = ssub.s32 2048, 2048
      %12 = vsyncadd [#allocation3], %s11
      %s13 = sshll.u32 [#allocation2], 4
      %s14 = int_to_ptr.vmem [resolvable:$true] %s13
      %19 = dma.hbm_to_vmem [thread:$0]  %s0, 2048, %s14, [#allocation3], 128, 128, 8
    $region5: #{tpu_custom_call.1} parent=1 // pred_fallthru
      _
    // Predicated region
    $region6: #{tpu_custom_call.1} parent=1 // pred_check
      _
    $region7: #{tpu_custom_call.1} parent=1 // pred_check_branch
      %21 = sbr.rel (0) target = $region9
    $region8: #{tpu_custom_call.1} parent=1 // pred_region
      %22 = dma.done [#allocation3], 2048
    $region9: #{tpu_custom_call.1} parent=1 // pred_fallthru
      _
    %v23 = vld [vmem:[#allocation2] sm:$0xff]
    %v24 = vld [vmem:[#allocation2 + $0x8] sm:$0xff]
    %v25 = vld [vmem:[#allocation2 + $0x10] sm:$0xff]
    %v26 = vld [vmem:[#allocation2 + $0x18] sm:$0xff]
    %v27 = vld [vmem:[#allocation2 + $0x20] sm:$0xff]
    %v28 = vld [vmem:[#allocation2 + $0x28] sm:$0xff]
    %v29 = vld [vmem:[#allocation2 + $0x30] sm:$0xff]
    %v30 = vld [vmem:[#allocation2 + $0x38] sm:$0xff]
    %v31 = vld [vmem:[#allocation2 + $0x40] sm:$0xff]
    %v32 = vld [vmem:[#allocation2 + $0x48] sm:$0xff]
    %v33 = vld [vmem:[#allocation2 + $0x50] sm:$0xff]
    %v34 = vld [vmem:[#allocation2 + $0x58] sm:$0xff]
    %v35 = vld [vmem:[#allocation2 + $0x60] sm:$0xff]
    %v36 = vld [vmem:[#allocation2 + $0x68] sm:$0xff]
    %v37 = vld [vmem:[#allocation2 + $0x70] sm:$0xff]
    %v38 = vld [vmem:[#allocation2 + $0x78] sm:$0xff]
    %39 = vmatprep.subr.mxu0 0.0
    %40 = vmatpush1.xpose.msra.mxu0 %v23
    %41 = vmatprep.subr.mxu0 0.0
    %42 = vmatpush1.xpose.msra.mxu0 %v24
    %43 = vmatprep.subr.mxu0 0.0
    %44 = vmatpush1.xpose.msra.mxu0 %v25
    %45 = vmatprep.subr.mxu0 0.0
    %46 = vmatpush1.xpose.msra.mxu0 %v26
    %47 = vmatprep.subr.mxu0 0.0
    %48 = vmatpush1.xpose.msra.mxu0 %v27
    %49 = vmatprep.subr.mxu0 0.0
    %50 = vmatpush1.xpose.msra.mxu0 %v28
    %51 = vmatprep.subr.mxu0 0.0
    %52 = vmatpush1.xpose.msra.mxu0 %v29
    %53 = vmatprep.subr.mxu0 0.0
    %54 = vmatpush1.xpose.msra.mxu0 %v30
    %55 = vmatprep.subr.mxu0 0.0
    %56 = vmatpush1.xpose.msra.mxu0 %v31
    %57 = vmatprep.subr.mxu0 0.0
    %58 = vmatpush1.xpose.msra.mxu0 %v32
    %59 = vmatprep.subr.mxu0 0.0
    %60 = vmatpush1.xpose.msra.mxu0 %v33
    %61 = vmatprep.subr.mxu0 0.0
    %62 = vmatpush1.xpose.msra.mxu0 %v34
    %63 = vmatprep.subr.mxu0 0.0
    %64 = vmatpush1.xpose.msra.mxu0 %v35
    %65 = vmatprep.subr.mxu0 0.0
    %66 = vmatpush1.xpose.msra.mxu0 %v36
    %67 = vmatprep.subr.mxu0 0.0
    %68 = vmatpush1.xpose.msra.mxu0 %v37
    %69 = vmatprep.subr.mxu0 0.0
    %70 = vmatpush1.xpose.msra.mxu0 %v38
    %71 = vmatprep.subr.mxu0 0.0
    %72 = vmatpush1.xpose.msra.mxu0 0.0
    %73 = vmatprep.subr.mxu0 0.0
    %74 = vmatpush1.xpose.msra.mxu0 0.0
    %75 = vmatprep.subr.mxu0 0.0
    %76 = vmatpush1.xpose.msra.mxu0 0.0
    %77 = vmatprep.subr.mxu0 0.0
    %78 = vmatpush1.xpose.msra.mxu0 0.0
    %79 = vmatprep.subr.mxu0 0.0
    %80 = vmatpush1.xpose.msra.mxu0 0.0
    %81 = vmatprep.subr.mxu0 0.0
    %82 = vmatpush1.xpose.msra.mxu0 0.0
    %83 = vmatprep.subr.mxu0 0.0
    %84 = vmatpush1.xpose.msra.mxu0 0.0
    %85 = vmatprep.subr.mxu0 0.0
    %86 = vmatpush1.xpose.msra.mxu0 0.0
    %87 = vmatprep.subr.mxu0 0.0
    %88 = vmatpush1.xpose.msra.mxu0 0.0
    %89 = vmatprep.subr.mxu0 0.0
    %90 = vmatpush1.xpose.msra.mxu0 0.0
    %91 = vmatprep.subr.mxu0 0.0
    %92 = vmatpush1.xpose.msra.mxu0 0.0
    %93 = vmatprep.subr.mxu0 0.0
    %94 = vmatpush1.xpose.msra.mxu0 0.0
    %95 = vmatprep.subr.mxu0 0.0
    %96 = vmatpush1.xpose.msra.mxu0 0.0
    %97 = vmatprep.subr.mxu0 0.0
    %98 = vmatpush1.xpose.msra.mxu0 0.0
    %99 = vmatprep.subr.mxu0 0.0
    %100 = vmatpush1.xpose.msra.mxu0 0.0
    %101 = vmatprep.subr.mxu0 0.0
    %102 = vmatpush1.xpose.msra.mxu0 0.0
    %103 = vmatprep.mubr.f32.mxu0 0.0
    %104 = vmatmul.mubr.f32.gmra.mrb[0].mxu0 %v23
    %v105 = vpop.f32.mrb[0].mxu0
    %v106 = vadd.f32 0.0, %v105
    %v107 = vpop.f32.mrb[0].mxu0
    %108 = vmatprep.mubr.f32.mxu0 0.0
    %109 = vmatmul.mubr.f32.gmra.mrb[0].mxu0 %v24
    %v110 = vpop.f32.mrb[0].mxu0
    %v111 = vadd.f32 0.0, %v110
    %v112 = vpop.f32.mrb[0].mxu0
    %113 = vmatprep.mubr.f32.mxu0 0.0
    %114 = vmatmul.mubr.f32.gmra.mrb[0].mxu0 %v25
    %v115 = vpop.f32.mrb[0].mxu0
    %v116 = vadd.f32 0.0, %v115
    %v117 = vpop.f32.mrb[0].mxu0
    %118 = vmatprep.mubr.f32.mxu0 0.0
    %119 = vmatmul.mubr.f32.gmra.mrb[0].mxu0 %v26
    %v120 = vpop.f32.mrb[0].mxu0
    %v121 = vadd.f32 0.0, %v120
    %v122 = vpop.f32.mrb[0].mxu0
    %123 = vmatprep.mubr.f32.mxu0 0.0
    %124 = vmatmul.mubr.f32.gmra.mrb[0].mxu0 %v27
    %v125 = vpop.f32.mrb[0].mxu0
    %v126 = vadd.f32 0.0, %v125
    %v127 = vpop.f32.mrb[0].mxu0
    %128 = vmatprep.mubr.f32.mxu0 0.0
    %129 = vmatmul.mubr.f32.gmra.mrb[0].mxu0 %v28
    %v130 = vpop.f32.mrb[0].mxu0
    %v131 = vadd.f32 0.0, %v130
    %v132 = vpop.f32.mrb[0].mxu0
    %133 = vmatprep.mubr.f32.mxu0 0.0
    %134 = vmatmul.mubr.f32.gmra.mrb[0].mxu0 %v29
    %v135 = vpop.f32.mrb[0].mxu0
    %v136 = vadd.f32 0.0, %v135
    %v137 = vpop.f32.mrb[0].mxu0
    %138 = vmatprep.mubr.f32.mxu0 0.0
    %139 = vmatmul.mubr.f32.gmra.mrb[0].mxu0 %v30
    %v140 = vpop.f32.mrb[0].mxu0
    %v141 = vadd.f32 0.0, %v140
    %v142 = vpop.f32.mrb[0].mxu0
    %143 = vmatprep.mubr.f32.mxu0 0.0
    %144 = vmatmul.mubr.f32.gmra.mrb[0].mxu0 %v31
    %v145 = vpop.f32.mrb[0].mxu0
    %v146 = vadd.f32 0.0, %v145
    %v147 = vpop.f32.mrb[0].mxu0
    %148 = vmatprep.mubr.f32.mxu0 0.0
    %149 = vmatmul.mubr.f32.gmra.mrb[0].mxu0 %v32
    %v150 = vpop.f32.mrb[0].mxu0
    %v151 = vadd.f32 0.0, %v150
    %v152 = vpop.f32.mrb[0].mxu0
    %153 = vmatprep.mubr.f32.mxu0 0.0
    %154 = vmatmul.mubr.f32.gmra.mrb[0].mxu0 %v33
    %v155 = vpop.f32.mrb[0].mxu0
    %v156 = vadd.f32 0.0, %v155
    %v157 = vpop.f32.mrb[0].mxu0
    %158 = vmatprep.mubr.f32.mxu0 0.0
    %159 = vmatmul.mubr.f32.gmra.mrb[0].mxu0 %v34
    %v160 = vpop.f32.mrb[0].mxu0
    %v161 = vadd.f32 0.0, %v160
    %v162 = vpop.f32.mrb[0].mxu0
    %163 = vmatprep.mubr.f32.mxu0 0.0
    %164 = vmatmul.mubr.f32.gmra.mrb[0].mxu0 %v35
    %v165 = vpop.f32.mrb[0].mxu0
    %v166 = vadd.f32 0.0, %v165
    %v167 = vpop.f32.mrb[0].mxu0
    %168 = vmatprep.mubr.f32.mxu0 0.0
    %169 = vmatmul.mubr.f32.gmra.mrb[0].mxu0 %v36
    %v170 = vpop.f32.mrb[0].mxu0
    %v171 = vadd.f32 0.0, %v170
    %v172 = vpop.f32.mrb[0].mxu0
    %173 = vmatprep.mubr.f32.mxu0 0.0
    %174 = vmatmul.mubr.f32.gmra.mrb[0].mxu0 %v37
    %v175 = vpop.f32.mrb[0].mxu0
    %v176 = vadd.f32 0.0, %v175
    %v177 = vpop.f32.mrb[0].mxu0
    %178 = vmatprep.mubr.f32.mxu0 0.0
    %179 = vmatmul.mubr.f32.gmra.mrb[0].mxu0 %v38
    %v180 = vpop.f32.mrb[0].mxu0
    %v181 = vadd.f32 0.0, %v180
    %v182 = vpop.f32.mrb[0].mxu0
    %183 = vdwg.mxu0
    %v184 = vmul.f32 %v106, 0.03125
    %v185 = vmul.f32 %v111, 0.03125
    %v186 = vmul.f32 %v116, 0.03125
    %v187 = vmul.f32 %v121, 0.03125
    %v188 = vmul.f32 %v126, 0.03125
    %v189 = vmul.f32 %v131, 0.03125
    %v190 = vmul.f32 %v136, 0.03125
    %v191 = vmul.f32 %v141, 0.03125
    %v192 = vmul.f32 %v146, 0.03125
    %v193 = vmul.f32 %v151, 0.03125
    %v194 = vmul.f32 %v156, 0.03125
    %v195 = vmul.f32 %v161, 0.03125
    %v196 = vmul.f32 %v166, 0.03125
    %v197 = vmul.f32 %v171, 0.03125
    %v198 = vmul.f32 %v176, 0.03125
    %v199 = vmul.f32 %v181, 0.03125
    %200 = vst [vmem:[#allocation5] sm:$0xff] %v184
    %201 = vst [vmem:[#allocation5 + $0x8] sm:$0xff] %v185
    %202 = vst [vmem:[#allocation5 + $0x10] sm:$0xff] %v186
    %203 = vst [vmem:[#allocation5 + $0x18] sm:$0xff] %v187
    %204 = vst [vmem:[#allocation5 + $0x20] sm:$0xff] %v188
    %205 = vst [vmem:[#allocation5 + $0x28] sm:$0xff] %v189
    %206 = vst [vmem:[#allocation5 + $0x30] sm:$0xff] %v190
    %207 = vst [vmem:[#allocation5 + $0x38] sm:$0xff] %v191
    %208 = vst [vmem:[#allocation5 + $0x40] sm:$0xff] %v192
    %209 = vst [vmem:[#allocation5 + $0x48] sm:$0xff] %v193
    %210 = vst [vmem:[#allocation5 + $0x50] sm:$0xff] %v194
    %211 = vst [vmem:[#allocation5 + $0x58] sm:$0xff] %v195
    %212 = vst [vmem:[#allocation5 + $0x60] sm:$0xff] %v196
    %213 = vst [vmem:[#allocation5 + $0x68] sm:$0xff] %v197
    %214 = vst [vmem:[#allocation5 + $0x70] sm:$0xff] %v198
    %215 = vst [vmem:[#allocation5 + $0x78] sm:$0xff] %v199
    // Predicated region
    $region10: #{tpu_custom_call.1} parent=1 // pred_check
      _
    $region11: #{tpu_custom_call.1} parent=1 // pred_check_branch
      %217 = sbr.rel (0) target = $region13
    $region12: #{tpu_custom_call.1} parent=1 // pred_region
      %s219 = ssub.s32 2048, 2048
      %220 = vsyncadd [#allocation4], %s219
      %s221 = sshll.u32 [#allocation5], 4
      %s222 = int_to_ptr.vmem [resolvable:$true] %s221
      %227 = dma.vmem_to_hbm [thread:$0]  %s222, 2048, %s1, [#allocation4], 128, 128, 8
    $region13: #{tpu_custom_call.1} parent=1 // pred_fallthru
      _
    // Predicated region
    $region14: #{tpu_custom_call.1} parent=1 // pred_check
      _
    $region15: #{tpu_custom_call.1} parent=1 // pred_check_branch
      %229 = sbr.rel (0) target = $region17
    $region16: #{tpu_custom_call.1} parent=1 // pred_region
      %230 = dma.done [#allocation4], 2048
    $region17: #{tpu_custom_call.1} parent=1 // pred_fallthru
      _
    %231 = vsyncpa [#allocation3], 1
    %232 = vsyncpa [#allocation4], 1

</llo_original>
